<compile_context>
chip_gen: v6e
topology: v6e:2x2x1
jax: 0.10.0
libtpu: 0.0.40
codegen_flags: <defaults>
</compile_context>

<pallas_src>
import jax
import jax.numpy as jnp
from jax.experimental import pallas as pl
from jax.experimental.pallas import tpu as pltpu


_VMEM_BLOCK_BUDGET = 32 * 1024 * 1024   # bytes budgeted for pipelined blocks + resident W
_VMEM_LIMIT_BYTES = 48 * 1024 * 1024    # scoped VMEM limit: headroom on v7x (64 MiB physical)


def raw_graph_conv_kernel(deg_ref, x_ref, w_ref, b_ref, o_ref):
    """One row block: out = sqrt(deg)^2 * (x @ W_pad) + b_pad (f32 accumulation)."""
    # MXU matmul in x's native dtype, accumulate in f32.
    acc = jnp.dot(x_ref[...], w_ref[...], preferred_element_type=jnp.float32)
    # (D*A*D) @ x == diag(sqrt(deg)^2) @ x -> per-row scale; keep sqrt()^2 to
    # match the reference rounding path, applied on the f32 accumulator.
    sd = jnp.sqrt(deg_ref[...])                       # (tm, 1), EUP sqrt
    o_ref[...] = ((sd * sd) * acc + b_ref[...]).astype(o_ref.dtype)


def _degree_from_edges(edge_index, num_nodes):
    """deg = row-sum of (eye(N) with A[src, dst] = 1) WITHOUT building A.

    Set semantics preserved: duplicate edges and explicit self-loops do not
    increment the degree twice.  Dedup via lexsort of (src, dst) pairs — no
    src*N+dst key, so no int32 overflow for large N.
    """
    deg = jnp.ones((num_nodes,), jnp.float32)         # eye() diagonal contribution
    num_edges = edge_index.shape[1]
    if num_edges == 0:
        return deg
    src = edge_index[0].astype(jnp.int32)
    dst = edge_index[1].astype(jnp.int32)
    order = jnp.lexsort((dst, src))                   # sort by (src, dst)
    ss = src[order]
    ds = dst[order]
    first = jnp.concatenate(
        [jnp.ones((1,), dtype=bool), (ss[1:] != ss[:-1]) | (ds[1:] != ds[:-1])])
    valid = first & (ss != ds)                        # self-loops already counted by eye
    rows = jnp.where(valid, ss, 0)
    return deg.at[rows].add(jnp.where(valid, 1.0, 0.0))


def _round_up(v, m):
    return ((v + m - 1) // m) * m


def raw_graph_conv(x, edge_index, weight, bias, *, tm=None):
    """x: (N, in_dim); edge_index: (2, E) int; weight: (out_dim, in_dim); bias: (out_dim,)."""
    N, in_dim = x.shape
    out_dim = weight.shape[0]
    x_bytes = x.dtype.itemsize
    sublane = max(8, 32 // x_bytes)                   # 8 for f32, 16 for bf16, 32 for int8

    # Glue (data-dependent, stays in JAX): per-node degree from edge_index.
    deg = _degree_from_edges(edge_index, N).reshape(N, 1)

    # Lane-dense output: pad out_dim to a multiple of 128 only when needed.
    out_pad = _round_up(out_dim, 128)
    w_t = weight.T.astype(x.dtype)                    # keep MXU inputs in x's dtype
    b_p = bias.astype(jnp.float32).reshape(1, out_dim)
    if out_pad != out_dim:
        w_t = jnp.pad(w_t, ((0, 0), (0, out_pad - out_dim)))
        b_p = jnp.pad(b_p, ((0, 0), (0, out_pad - out_dim)))

    # Row-tile size from an explicit VMEM budget:
    #   2x (deg + x + out) blocks (double-buffered) + resident W/bias (budgeted at 2x).
    if tm is None:
        w_resident = 2 * (in_dim * out_pad * w_t.dtype.itemsize + out_pad * 4)
        tm = 1024
        while tm > sublane:
            blocks = 2 * tm * (4 + in_dim * x_bytes + out_pad * 4)
            if blocks + w_resident <= _VMEM_BLOCK_BUDGET:
                break
            tm //= 2
        tm = max(tm, sublane)
    tm = _round_up(tm, sublane)
    tm = min(tm, _round_up(N, sublane))               # don't over-pad tiny graphs

    # Pad N to a multiple of tm (pad rows: x = 0, deg = 1) instead of collapsing
    # the grid to one giant block: keeps the pipeline + both v7x TCs busy.
    n_pad = _round_up(N, tm)
    if n_pad != N:
        x = jnp.pad(x, ((0, n_pad - N), (0, 0)))
        deg = jnp.pad(deg, ((0, n_pad - N), (0, 0)), constant_values=1.0)

    grid = (n_pad // tm,)

    # NOTE: W^T is kept fully resident in VMEM.  For very large in_dim*out_pad
    # a second "parallel" grid axis over out_pad columns would be needed.
    def call(single_buffer_weights):
        const_map = lambda i: (0, 0)
        if single_buffer_weights:
            w_spec = pl.BlockSpec((in_dim, out_pad), const_map,
                                  pipeline_mode=pl.Buffered(1))
            b_spec = pl.BlockSpec((1, out_pad), const_map,
                                  pipeline_mode=pl.Buffered(1))
        else:
            w_spec = pl.BlockSpec((in_dim, out_pad), const_map)
            b_spec = pl.BlockSpec((1, out_pad), const_map)
        return pl.pallas_call(
            raw_graph_conv_kernel,
            out_shape=jax.ShapeDtypeStruct((n_pad, out_pad), jnp.float32),
            grid=grid,
            in_specs=[
                pl.BlockSpec((tm, 1), lambda i: (i, 0)),        # deg row block
                pl.BlockSpec((tm, in_dim), lambda i: (i, 0)),   # x row block (native dtype)
                w_spec,                                          # W^T (resident)
                b_spec,                                          # bias (resident)
            ],
            out_specs=pl.BlockSpec((tm, out_pad), lambda i: (i, 0)),
            compiler_params=pltpu.CompilerParams(
                dimension_semantics=("parallel",),               # shards row blocks across TCs
                vmem_limit_bytes=_VMEM_LIMIT_BYTES),
        )(deg, x, w_t, b_p)

    try:
        out = call(True)        # single-buffer the constant-index W / bias blocks
    except Exception:           # pipeline_mode unsupported on this jax build
        out = call(False)

    if n_pad != N or out_pad != out_dim:
        out = out[:N, :out_dim]
    return out


def raw_graph_conv_ref(x, edge_index, weight, bias):
    """Pure-JAX reference mirroring the PyTorch code line by line (dense path)."""
    N = x.shape[0]
    A = jnp.eye(N, dtype=jnp.float32)
    A = A.at[edge_index[0], edge_index[1]].set(1.0)
    D = jnp.sqrt(jnp.diag(jnp.sum(A, axis=1)))
    h = (D * A * D) @ x
    return h @ weight.T + bias


if __name__ == "__main__":
    key = jax.random.PRNGKey(0)
    kx, kw, kb = jax.random.split(key, 3)

    # Small deterministic shapes: N=16 nodes, in_dim=32, out_dim=8.
    N, in_dim, out_dim = 16, 32, 8
    x = jax.random.normal(kx, (N, in_dim), dtype=jnp.float32)

    # Directed ring + reverse ring, plus one duplicate edge (0->1) and one
    # explicit self-loop (3->3) to exercise the set semantics of A[i, j] = 1.
    src = jnp.arange(N, dtype=jnp.int32)
    dst = (src + 1) % N
    edge_index = jnp.concatenate(
        [jnp.stack([src, dst], axis=0),
         jnp.stack([dst, src], axis=0),
         jnp.array([[0, 3], [1, 3]], dtype=jnp.int32)],
        axis=1)

    # nn.Linear(in_dim, out_dim) parameters: uniform(-1/sqrt(in_dim), 1/sqrt(in_dim)).
    bound = 1.0 / (in_dim ** 0.5)
    weight = jax.random.uniform(kw, (out_dim, in_dim), jnp.float32, -bound, bound)
    bias = jax.random.uniform(kb, (out_dim,), jnp.float32, -bound, bound)

    out = raw_graph_conv(x, edge_index, weight, bias, tm=8)     # grid=(2,)
    out = jax.block_until_ready(out)
    ref = raw_graph_conv_ref(x, edge_index, weight, bias)
    assert out.shape == (N, out_dim)
    assert jnp.allclose(out, ref, atol=1e-4, rtol=1e-4), "mismatch vs reference (N=16)"

    # Second check: N=13 is not a multiple of the 8-row tile -> exercises the
    # row-padding path (pad rows x=0, deg=1) with a multi-step grid.
    N2 = 13
    x2 = x[:N2]
    src2 = jnp.arange(N2, dtype=jnp.int32)
    dst2 = (src2 + 1) % N2
    edge_index2 = jnp.concatenate(
        [jnp.stack([src2, dst2], axis=0), jnp.stack([dst2, src2], axis=0)], axis=1)
    out2 = jax.block_until_ready(raw_graph_conv(x2, edge_index2, weight, bias, tm=8))
    ref2 = raw_graph_conv_ref(x2, edge_index2, weight, bias)
    assert out2.shape == (N2, out_dim)
    assert jnp.allclose(out2, ref2, atol=1e-4, rtol=1e-4), "mismatch vs reference (N=13)"

    print("KERNEL_OK")
</pallas_src>

<mosaic_0001>
module attributes {stable_mosaic.version = 11 : i64} {
  func.func @raw_graph_conv_kernel(%arg0: i32, %arg1: memref<8x1xf32, #tpu.memory_space<vmem>>, %arg2: memref<8x32xf32, #tpu.memory_space<vmem>>, %arg3: memref<32x128xf32, #tpu.memory_space<vmem>>, %arg4: memref<1x128xf32, #tpu.memory_space<vmem>>, %arg5: memref<8x128xf32, #tpu.memory_space<vmem>>) attributes {dimension_semantics = [#tpu.dimension_semantics<parallel>], iteration_bounds = array<i64: 2>, scalar_prefetch = 0 : i64, scratch_operands = 0 : i64, tpu.core_type = #tpu.core_type<tc>, window_params = [{transform_indices = @transform_0, window_bounds = array<i64: 8, 1>}, {transform_indices = @transform_1, window_bounds = array<i64: 8, 32>}, {pipeline_mode = #tpu.pipeline_mode<synchronous>, transform_indices = @transform_2, window_bounds = array<i64: 32, 128>}, {pipeline_mode = #tpu.pipeline_mode<synchronous>, transform_indices = @transform_3, window_bounds = array<i64: 1, 128>}, {transform_indices = @transform_4, window_bounds = array<i64: 8, 128>}]} {
    %c0 = arith.constant 0 : index
    %c0_0 = arith.constant 0 : index
    %0 = vector.load %arg2[%c0, %c0_0] : memref<8x32xf32, #tpu.memory_space<vmem>>, vector<8x32xf32>
    %c0_1 = arith.constant 0 : index
    %c0_2 = arith.constant 0 : index
    %1 = vector.load %arg3[%c0_1, %c0_2] : memref<32x128xf32, #tpu.memory_space<vmem>>, vector<32x128xf32>
    %cst = arith.constant dense<0.000000e+00> : vector<8x128xf32>
    %2 = tpu.matmul %0, %1, %cst {dimension_numbers = #tpu.dot_dimension_numbers<[1], [0], [0], [1], [0, 0, 1, 1], [], []>} : vector<8x32xf32>, vector<32x128xf32>, vector<8x128xf32> -> vector<8x128xf32>
    %c0_3 = arith.constant 0 : index
    %c0_4 = arith.constant 0 : index
    %3 = vector.load %arg1[%c0_3, %c0_4] : memref<8x1xf32, #tpu.memory_space<vmem>>, vector<8x1xf32>
    %4 = math.sqrt %3 : vector<8x1xf32>
    %5 = arith.mulf %4, %4 : vector<8x1xf32>
    %6 = vector.broadcast %5 : vector<8x1xf32> to vector<8x128xf32>
    %7 = arith.mulf %6, %2 : vector<8x128xf32>
    %c0_5 = arith.constant 0 : index
    %c0_6 = arith.constant 0 : index
    %8 = vector.load %arg4[%c0_5, %c0_6] : memref<1x128xf32, #tpu.memory_space<vmem>>, vector<1x128xf32>
    %9 = vector.broadcast %8 : vector<1x128xf32> to vector<8x128xf32>
    %10 = arith.addf %7, %9 : vector<8x128xf32>
    %c0_7 = arith.constant 0 : index
    %c0_8 = arith.constant 0 : index
    %11 = vector.load %arg5[%c0_7, %c0_8] : memref<8x128xf32, #tpu.memory_space<vmem>>, vector<8x128xf32>
    tpu.vector_store %arg5[%c0_7, %c0_8], %10 {strides = array<i32>} : memref<8x128xf32, #tpu.memory_space<vmem>>, vector<8x128xf32>,
    return
  }
  func.func @transform_0(%arg0: i32) -> (i32, i32) {
    %c0_i32 = arith.constant 0 : i32
    %c0_i32_0 = arith.constant 0 : i32
    return %arg0, %c0_i32 : i32, i32
  }
  func.func @transform_1(%arg0: i32) -> (i32, i32) {
    %c0_i32 = arith.constant 0 : i32
    %c0_i32_0 = arith.constant 0 : i32
    return %arg0, %c0_i32 : i32, i32
  }
  func.func @transform_2(%arg0: i32) -> (i32, i32) {
    %c0_i32 = arith.constant 0 : i32
    %c0_i32_0 = arith.constant 0 : i32
    %c0_i32_1 = arith.constant 0 : i32
    return %c0_i32, %c0_i32_0 : i32, i32
  }
  func.func @transform_3(%arg0: i32) -> (i32, i32) {
    %c0_i32 = arith.constant 0 : i32
    %c0_i32_0 = arith.constant 0 : i32
    %c0_i32_1 = arith.constant 0 : i32
    return %c0_i32, %c0_i32_0 : i32, i32
  }
  func.func @transform_4(%arg0: i32) -> (i32, i32) {
    %c0_i32 = arith.constant 0 : i32
    %c0_i32_0 = arith.constant 0 : i32
    return %arg0, %c0_i32 : i32, i32
  }
}

module attributes {stable_mosaic.version = 11 : i64} {
  func.func @raw_graph_conv_kernel(%arg0: i32, %arg1: memref<8x1xf32, #tpu.memory_space<vmem>>, %arg2: memref<8x32xf32, #tpu.memory_space<vmem>>, %arg3: memref<32x128xf32, #tpu.memory_space<vmem>>, %arg4: memref<1x128xf32, #tpu.memory_space<vmem>>, %arg5: memref<8x128xf32, #tpu.memory_space<vmem>>) attributes {dimension_semantics = [#tpu.dimension_semantics<parallel>], iteration_bounds = array<i64: 2>, scalar_prefetch = 0 : i64, scratch_operands = 0 : i64, tpu.core_type = #tpu.core_type<tc>, window_params = [{transform_indices = @transform_0, window_bounds = array<i64: 8, 1>}, {transform_indices = @transform_1, window_bounds = array<i64: 8, 32>}, {pipeline_mode = #tpu.pipeline_mode<synchronous>, transform_indices = @transform_2, window_bounds = array<i64: 32, 128>}, {pipeline_mode = #tpu.pipeline_mode<synchronous>, transform_indices = @transform_3, window_bounds = array<i64: 1, 128>}, {transform_indices = @transform_4, window_bounds = array<i64: 8, 128>}]} {
    %c0 = arith.constant 0 : index
    %c0_0 = arith.constant 0 : index
    %0 = vector.load %arg2[%c0, %c0_0] : memref<8x32xf32, #tpu.memory_space<vmem>>, vector<8x32xf32>
    %c0_1 = arith.constant 0 : index
    %c0_2 = arith.constant 0 : index
    %1 = vector.load %arg3[%c0_1, %c0_2] : memref<32x128xf32, #tpu.memory_space<vmem>>, vector<32x128xf32>
    %cst = arith.constant dense<0.000000e+00> : vector<8x128xf32>
    %2 = tpu.matmul %0, %1, %cst {dimension_numbers = #tpu.dot_dimension_numbers<[1], [0], [0], [1], [0, 0, 1, 1], [], []>} : vector<8x32xf32>, vector<32x128xf32>, vector<8x128xf32> -> vector<8x128xf32>
    %c0_3 = arith.constant 0 : index
    %c0_4 = arith.constant 0 : index
    %3 = vector.load %arg1[%c0_3, %c0_4] : memref<8x1xf32, #tpu.memory_space<vmem>>, vector<8x1xf32>
    %4 = math.sqrt %3 : vector<8x1xf32>
    %5 = arith.mulf %4, %4 : vector<8x1xf32>
    %6 = vector.broadcast %5 : vector<8x1xf32> to vector<8x128xf32>
    %7 = arith.mulf %6, %2 : vector<8x128xf32>
    %c0_5 = arith.constant 0 : index
    %c0_6 = arith.constant 0 : index
    %8 = vector.load %arg4[%c0_5, %c0_6] : memref<1x128xf32, #tpu.memory_space<vmem>>, vector<1x128xf32>
    %9 = vector.broadcast %8 : vector<1x128xf32> to vector<8x128xf32>
    %10 = arith.addf %7, %9 : vector<8x128xf32>
    %c0_7 = arith.constant 0 : index
    %c0_8 = arith.constant 0 : index
    %11 = vector.load %arg5[%c0_7, %c0_8] : memref<8x128xf32, #tpu.memory_space<vmem>>, vector<8x128xf32>
    tpu.vector_store %arg5[%c0_7, %c0_8], %10 {strides = array<i32>} : memref<8x128xf32, #tpu.memory_space<vmem>>, vector<8x128xf32>,
    return
  }
  func.func @transform_0(%arg0: i32) -> (i32, i32) {
    %c0_i32 = arith.constant 0 : i32
    %c0_i32_0 = arith.constant 0 : i32
    return %arg0, %c0_i32 : i32, i32
  }
  func.func @transform_1(%arg0: i32) -> (i32, i32) {
    %c0_i32 = arith.constant 0 : i32
    %c0_i32_0 = arith.constant 0 : i32
    return %arg0, %c0_i32 : i32, i32
  }
  func.func @transform_2(%arg0: i32) -> (i32, i32) {
    %c0_i32 = arith.constant 0 : i32
    %c0_i32_0 = arith.constant 0 : i32
    %c0_i32_1 = arith.constant 0 : i32
    return %c0_i32, %c0_i32_0 : i32, i32
  }
  func.func @transform_3(%arg0: i32) -> (i32, i32) {
    %c0_i32 = arith.constant 0 : i32
    %c0_i32_0 = arith.constant 0 : i32
    %c0_i32_1 = arith.constant 0 : i32
    return %c0_i32, %c0_i32_0 : i32, i32
  }
  func.func @transform_4(%arg0: i32) -> (i32, i32) {
    %c0_i32 = arith.constant 0 : i32
    %c0_i32_0 = arith.constant 0 : i32
    return %arg0, %c0_i32 : i32, i32
  }
}

</mosaic_0001>

<llo_original>
// kernel: tpu_custom_call.1
$region0: #{tpu_custom_call.1}
  #allocation0 [shape = 'u32[]', space=smem, size = 0x4, offset = 0x4, fixed_abs, tag = 'smem constant byte address 0x4 - core index']
  #allocation1 [shape = 'u32[144,128]{1,0:T(1,128)}', space=vmem, size = 0x12000, scoped, tag = 'internal scratch']
  %s0 = inlined_call_operand.vmem [shape: f32[16,1], index: 0, kind: input, shape index: {}]
  %s1 = inlined_call_operand.vmem [shape: f32[16,32], index: 1, kind: input, shape index: {}]
  %s2 = inlined_call_operand.hbm [shape: f32[32,128], index: 2, kind: input, shape index: {}]
  %s3 = inlined_call_operand.vmem [shape: f32[1,128], index: 3, kind: input, shape index: {}]
  %s4 = inlined_call_operand.hbm [shape: f32[16,128], index: 4, kind: output, shape index: {}]
  %s5 = sld [smem:[#allocation0]]
  $region53: #{tpu_custom_call.1} parent=0
    _
  %s7 = ssub.s32 1, %s5
  %s8 = scalar_select 0, %s7, %s5
  $region1: #{tpu_custom_call.1} parent=0
    #allocation2 [shape = 'u8[16384]{0}', space=vmem, size = 0x4000, scoped, tag = 'input window, operand 2, single buffered']
    #allocation3 [shape = 's32[2]{0}', space=sflag, size = 0x8, scoped, tag = 'scoped memory for tpu_custom_call.1']
    #allocation4 [shape = 's32[2]{0}', space=sflag, size = 0x8, scoped, tag = 'scoped memory for tpu_custom_call.1']
    #allocation5 [shape = 'u8[8192]{0}', space=vmem, size = 0x2000, scoped, tag = 'output window, operand 0']
    %9 = vsyncpa [#allocation3], 0
    %10 = vsyncpa [#allocation4], 0
    %s11 = scalar_lea.sflag [#allocation4], 1
    %12 = vsyncpa %s11, 0
    loop: start=0, step=1, limit=4
    $region2: #{tpu_custom_call.1} parent=1 // loop_pre_header
      _
    $region3: #{tpu_custom_call.1} parent=1 // loop_header
      %s14 = sphi 0, %s18
      %p15 = scmp.ge.s32.totalorder %s14, 4
      %s24 = sphi 0, %s26
      %s27 = sphi 0, %s24
      %s28 = sphi 0, %s27
      %s44 = sphi 0, %s28
      %s50 = sphi 0, %s52
      %s53 = sphi 0, %s50
      %s54 = sphi 0, %s53
      %s70 = sphi 0, %s54
      %s74 = sphi 0, %s74
      %s76 = sphi 0, %s74
      %s77 = sphi 0, %s76
      %s91 = sphi 0, %s77
      %s95 = sphi 0, %s95
      %s97 = sphi 0, %s95
      %s98 = sphi 0, %s97
      %s112 = sphi 0, %s98
      %s118 = sphi 0, %s120
      %s121 = sphi 0, %s118
      %s122 = sphi 0, %s121
      %s138 = sphi 0, %s122
    $region4: #{tpu_custom_call.1} parent=1 // loop_header_branch
      %17 = sbr.rel (%p15) target = $region8
    $region5: #{tpu_custom_call.1} parent=1 // loop_body
      %s19 = ssub.s32 %s14, 1
      %s20 = ssub.s32 %s14, 2
      %s21 = sadd.s32 %s14, 1
      %s22 = ssub.s32 %s14, %s21
      %p23 = scmp.eq.s32.totalorder %s22, 0
      %s25 = sadd.s32 %s24, 1
      %s26 = scalar_select %p23, %s24, %s25
      %p29 = pneg %p23
      %p30 = scmp.eq.s32.totalorder %s14, 1
      %p31 = por %p29, %p30
      %p32 = scmp.ne.s32.totalorder %s24, %s27
      %p33 = scmp.eq.s32.totalorder %s14, 0
      %p34 = por %p32, %p33
      %p35 = scmp.ne.s32.totalorder %s24, %s27
      %p36 = scmp.eq.s32.totalorder %s19, 1
      %p37 = por %p35, %p36
      %p38 = scmp.ne.s32.totalorder %s27, %s28
      %p39 = scmp.eq.s32.totalorder %s19, 0
      %p40 = por %p38, %p39
      %p41 = scmp.ne.s32.totalorder %s27, %s28
      %p42 = scmp.eq.s32.totalorder %s20, 1
      %p43 = por %p41, %p42
      %p45 = scmp.ne.s32.totalorder %s28, %s44
      %p46 = scmp.eq.s32.totalorder %s20, 0
      %p47 = por %p45, %p46
      %s48 = ssub.s32 %s14, %s21
      %p49 = scmp.eq.s32.totalorder %s48, 0
      %s51 = sadd.s32 %s50, 1
      %s52 = scalar_select %p49, %s50, %s51
      %p55 = pneg %p49
      %p56 = scmp.eq.s32.totalorder %s14, 1
      %p57 = por %p55, %p56
      %p58 = scmp.ne.s32.totalorder %s50, %s53
      %p59 = scmp.eq.s32.totalorder %s14, 0
      %p60 = por %p58, %p59
      %p61 = scmp.ne.s32.totalorder %s50, %s53
      %p62 = scmp.eq.s32.totalorder %s19, 1
      %p63 = por %p61, %p62
      %p64 = scmp.ne.s32.totalorder %s53, %s54
      %p65 = scmp.eq.s32.totalorder %s19, 0
      %p66 = por %p64, %p65
      %p67 = scmp.ne.s32.totalorder %s53, %s54
      %p68 = scmp.eq.s32.totalorder %s20, 1
      %p69 = por %p67, %p68
      %p71 = scmp.ne.s32.totalorder %s54, %s70
      %p72 = scmp.eq.s32.totalorder %s20, 0
      %p73 = por %p71, %p72
      %s75 = sadd.s32 %s74, 1
      %p78 = scmp.eq.s32.totalorder %s14, 1
      %p79 = scmp.ne.s32.totalorder %s74, %s76
      %p80 = scmp.eq.s32.totalorder %s14, 0
      %p81 = por %p79, %p80
      %p82 = scmp.ne.s32.totalorder %s74, %s76
      %p83 = scmp.eq.s32.totalorder %s19, 1
      %p84 = por %p82, %p83
      %p85 = scmp.ne.s32.totalorder %s76, %s77
      %p86 = scmp.eq.s32.totalorder %s19, 0
      %p87 = por %p85, %p86
      %p88 = scmp.ne.s32.totalorder %s76, %s77
      %p89 = scmp.eq.s32.totalorder %s20, 1
      %p90 = por %p88, %p89
      %p92 = scmp.ne.s32.totalorder %s77, %s91
      %p93 = scmp.eq.s32.totalorder %s20, 0
      %p94 = por %p92, %p93
      %s96 = sadd.s32 %s95, 1
      %p99 = scmp.eq.s32.totalorder %s14, 1
      %p100 = scmp.ne.s32.totalorder %s95, %s97
      %p101 = scmp.eq.s32.totalorder %s14, 0
      %p102 = por %p100, %p101
      %p103 = scmp.ne.s32.totalorder %s95, %s97
      %p104 = scmp.eq.s32.totalorder %s19, 1
      %p105 = por %p103, %p104
      %p106 = scmp.ne.s32.totalorder %s97, %s98
      %p107 = scmp.eq.s32.totalorder %s19, 0
      %p108 = por %p106, %p107
      %p109 = scmp.ne.s32.totalorder %s97, %s98
      %p110 = scmp.eq.s32.totalorder %s20, 1
      %p111 = por %p109, %p110
      %p113 = scmp.ne.s32.totalorder %s98, %s112
      %p114 = scmp.eq.s32.totalorder %s20, 0
      %p115 = por %p113, %p114
      %s116 = ssub.s32 %s14, %s21
      %p117 = scmp.eq.s32.totalorder %s116, 0
      %s119 = sadd.s32 %s118, 1
      %s120 = scalar_select %p117, %s118, %s119
      %p123 = pneg %p117
      %p124 = scmp.eq.s32.totalorder %s14, 1
      %p125 = por %p123, %p124
      %p126 = scmp.ne.s32.totalorder %s118, %s121
      %p127 = scmp.eq.s32.totalorder %s14, 0
      %p128 = por %p126, %p127
      %p129 = scmp.ne.s32.totalorder %s118, %s121
      %p130 = scmp.eq.s32.totalorder %s19, 1
      %p131 = por %p129, %p130
      %p132 = scmp.ne.s32.totalorder %s121, %s122
      %p133 = scmp.eq.s32.totalorder %s19, 0
      %p134 = por %p132, %p133
      %p135 = scmp.ne.s32.totalorder %s121, %s122
      %p136 = scmp.eq.s32.totalorder %s20, 1
      %p137 = por %p135, %p136
      %p139 = scmp.ne.s32.totalorder %s122, %s138
      %p140 = scmp.eq.s32.totalorder %s20, 0
      %p141 = por %p139, %p140
      %p142 = scmp.le.s32.totalorder 1, %s14
      %p143 = scmp.lt.s32.totalorder %s14, 3
      %p144 = pnand %p142, %p143
      %p145 = pneg %p144
      // Predicated region
      $region9: #{tpu_custom_call.1} parent=5 // pred_check
        _
      $region10: #{tpu_custom_call.1} parent=5 // pred_check_branch
        %147 = sbr.rel (%p144) target = $region12
      $region11: #{tpu_custom_call.1} parent=5 // pred_region
        %s148 = ssub.s32 %s14, 1
        // Predicated region
        $region13: #{tpu_custom_call.1} parent=11 // pred_check
          %p149 = pneg %p87
        $region14: #{tpu_custom_call.1} parent=11 // pred_check_branch
          %151 = sbr.rel (%p149) target = $region16
        $region15: #{tpu_custom_call.1} parent=11 // pred_region
          %s153 = ssub.s32 512, 512
          %154 = vsyncadd [#allocation3], %s153
          %s155 = sshll.u32 [#allocation2], 4
          %s156 = int_to_ptr.vmem [resolvable:$true] %s155
          %161 = dma.hbm_to_vmem [thread:$0]  %s2, 512, %s156, [#allocation3], 128, 128, 8
        $region16: #{tpu_custom_call.1} parent=11 // pred_fallthru
          _
        // Predicated region
        $region17: #{tpu_custom_call.1} parent=11 // pred_check
          %p162 = pneg %p108
        $region18: #{tpu_custom_call.1} parent=11 // pred_check_branch
          %164 = sbr.rel (%p162) target = $region20
        $region19: #{tpu_custom_call.1} parent=11 // pred_region
          _
        $region20: #{tpu_custom_call.1} parent=11 // pred_fallthru
          _
      $region12: #{tpu_custom_call.1} parent=5 // pred_fallthru
        _
      %p165 = scmp.lt.s32.totalorder %s14, 2
      // Predicated region
      $region21: #{tpu_custom_call.1} parent=5 // pred_check
        %p166 = pneg %p165
      $region22: #{tpu_custom_call.1} parent=5 // pred_check_branch
        %168 = sbr.rel (%p166) target = $region24
      $region23: #{tpu_custom_call.1} parent=5 // pred_region
        // Predicated region
        $region25: #{tpu_custom_call.1} parent=23 // pred_check
          %p169 = pneg %p34
        $region26: #{tpu_custom_call.1} parent=23 // pred_check_branch
          %171 = sbr.rel (%p169) target = $region28
        $region27: #{tpu_custom_call.1} parent=23 // pred_region
          %p172 = scmp.lt.s32.totalorder %s14, 1
          %s173 = scalar_select %p172, %s14, 1
          %s174 = smul.addr %s173, 8
          %s175 = scalar_lea.vmem %s0, %s174
        $region28: #{tpu_custom_call.1} parent=23 // pred_fallthru
          _
        // Predicated region
        $region29: #{tpu_custom_call.1} parent=23 // pred_check
          %p176 = pneg %p60
        $region30: #{tpu_custom_call.1} parent=23 // pred_check_branch
          %178 = sbr.rel (%p176) target = $region32
        $region31: #{tpu_custom_call.1} parent=23 // pred_region
          %p179 = scmp.lt.s32.totalorder %s14, 1
          %s180 = scalar_select %p179, %s14, 1
          %s181 = smul.addr %s180, 8
          %s182 = scalar_lea.vmem %s1, %s181
        $region32: #{tpu_custom_call.1} parent=23 // pred_fallthru
          _
      $region24: #{tpu_custom_call.1} parent=5 // pred_fallthru
        _
      %p183 = scmp.le.s32.totalorder 1, %s14
      %p184 = scmp.lt.s32.totalorder %s14, 3
      %p185 = pnand %p183, %p184
      %p186 = pneg %p185
      // Predicated region
      $region33: #{tpu_custom_call.1} parent=5 // pred_check
        _
      $region34: #{tpu_custom_call.1} parent=5 // pred_check_branch
        %188 = sbr.rel (%p185) target = $region36
      $region35: #{tpu_custom_call.1} parent=5 // pred_region
        %s189 = ssub.s32 %s14, 1
        // Predicated region
        $region37: #{tpu_custom_call.1} parent=35 // pred_check
          %p190 = pneg %p87
        $region38: #{tpu_custom_call.1} parent=35 // pred_check_branch
          %192 = sbr.rel (%p190) target = $region40
        $region39: #{tpu_custom_call.1} parent=35 // pred_region
          %193 = dma.done [#allocation3], 512
        $region40: #{tpu_custom_call.1} parent=35 // pred_fallthru
          _
        %p194 = scmp.lt.s32.totalorder %s19, 1
        %s195 = scalar_select %p194, %s19, 1
        %s196 = smul.addr %s195, 8
        %s197 = scalar_lea.vmem %s0, %s196
        %p198 = pneg %p40
        %p199 = pneg %p37
        %p200 = scmp.lt.s32.totalorder %s19, 1
        %s201 = scalar_select %p200, %s19, 1
        %s202 = smul.addr %s201, 8
        %s203 = scalar_lea.vmem %s1, %s202
        %p204 = pneg %p66
        %p205 = pneg %p63
        %p206 = pneg %p87
        %p207 = pneg %p84
        %p208 = pneg %p108
        %p209 = pneg %p105
        %p210 = pneg %p134
        %p211 = pneg %p131
        %s212 = sand.u32 %s121, 1
        %s213 = scalar_lea.sflag [#allocation4], %s212
        %s214 = sand.u32 %s121, 1
        %s215 = smul.addr %s214, 8
        %s216 = scalar_lea.vmem [#allocation5], %s215
        %p217 = scmp.lt.s32.totalorder %s19, 1
        %s218 = scalar_select %p217, %s19, 1
        %s219 = smul.addr %s218, 8
        %s220 = scalar_lea.vmem %s0, %s219
        %p221 = scmp.lt.s32.totalorder %s19, 1
        %s222 = scalar_select %p221, %s19, 1
        %s223 = smul.addr %s222, 8
        %s224 = scalar_lea.vmem %s1, %s223
        %v225 = vld [vmem:[%s224] sm:$0xff]
        %v226 = vld [vmem:[#allocation2] sm:$0xff]
        %v227 = vld [vmem:[#allocation2 + $0x8] sm:$0xff]
        %v228 = vld [vmem:[#allocation2 + $0x10] sm:$0xff]
        %v229 = vld [vmem:[#allocation2 + $0x18] sm:$0xff]
        %vm230 = vcmask 261120
        %v232 = vsel %vm230, %v225, 0
        %234 = vmatprep.subr.mxu0 0.0
        %235 = vmatpush1.msra.mxu0 0.0
        %236 = vmatprep.subr.mxu0 0.0
        %237 = vmatpush1.msra.mxu0 0.0
        %238 = vmatprep.subr.mxu0 0.0
        %239 = vmatpush1.msra.mxu0 0.0
        %240 = vmatprep.subr.mxu0 0.0
        %241 = vmatpush1.msra.mxu0 0.0
        %242 = vmatprep.subr.mxu0 0.0
        %243 = vmatpush1.msra.mxu0 0.0
        %244 = vmatprep.subr.mxu0 0.0
        %245 = vmatpush1.msra.mxu0 0.0
        %246 = vmatprep.subr.mxu0 0.0
        %247 = vmatpush1.msra.mxu0 0.0
        %248 = vmatprep.subr.mxu0 0.0
        %249 = vmatpush1.msra.mxu0 0.0
        %250 = vmatprep.subr.mxu0 0.0
        %251 = vmatpush1.msra.mxu0 0.0
        %252 = vmatprep.subr.mxu0 0.0
        %253 = vmatpush1.msra.mxu0 0.0
        %254 = vmatprep.subr.mxu0 0.0
        %255 = vmatpush1.msra.mxu0 0.0
        %256 = vmatprep.subr.mxu0 0.0
        %257 = vmatpush1.msra.mxu0 0.0
        %258 = vmatprep.subr.mxu0 0.0
        %259 = vmatpush1.msra.mxu0 %v229
        %260 = vmatprep.subr.mxu0 0.0
        %261 = vmatpush1.msra.mxu0 %v228
        %262 = vmatprep.subr.mxu0 0.0
        %263 = vmatpush1.msra.mxu0 %v227
        %264 = vmatprep.subr.mxu0 0.0
        %265 = vmatpush1.msra.mxu0 %v226
        %266 = vmatprep.subr.mxu0 0.0
        %267 = vmatpush2.msra.mxu0 0.0
        %268 = vmatprep.subr.mxu0 0.0
        %269 = vmatpush2.msra.mxu0 0.0
        %270 = vmatprep.subr.mxu0 0.0
        %271 = vmatpush2.msra.mxu0 0.0
        %272 = vmatprep.subr.mxu0 0.0
        %273 = vmatpush2.msra.mxu0 0.0
        %274 = vmatprep.subr.mxu0 0.0
        %275 = vmatpush2.msra.mxu0 0.0
        %276 = vmatprep.subr.mxu0 0.0
        %277 = vmatpush2.msra.mxu0 0.0
        %278 = vmatprep.subr.mxu0 0.0
        %279 = vmatpush2.msra.mxu0 0.0
        %280 = vmatprep.subr.mxu0 0.0
        %281 = vmatpush2.msra.mxu0 0.0
        %282 = vmatprep.subr.mxu0 0.0
        %283 = vmatpush2.msra.mxu0 0.0
        %284 = vmatprep.subr.mxu0 0.0
        %285 = vmatpush2.msra.mxu0 0.0
        %286 = vmatprep.subr.mxu0 0.0
        %287 = vmatpush2.msra.mxu0 0.0
        %288 = vmatprep.subr.mxu0 0.0
        %289 = vmatpush2.msra.mxu0 0.0
        %290 = vmatprep.subr.mxu0 0.0
        %291 = vmatpush2.msra.mxu0 0.0
        %292 = vmatprep.subr.mxu0 0.0
        %293 = vmatpush2.msra.mxu0 0.0
        %294 = vmatprep.subr.mxu0 0.0
        %295 = vmatpush2.msra.mxu0 0.0
        %296 = vmatprep.subr.mxu0 0.0
        %297 = vmatpush2.msra.mxu0 0.0
        %298 = vmatprep.mubr.f32.mxu0 0.0
        %299 = vmatmul.mubr.f32.gmra.mxu0 %v232
        %v300 = vpop.f32.mrf.mxu0
        %v301 = vadd.f32 0.0, %v300
        %v302 = vpop.f32.mrf.mxu0
        %303 = vdwg.mxu0
        %v304 = vld [vmem:[%s220] sm:$0xff]
        %v305 = vrsqrt.pop %v304
        %v306 = vmul.f32 %v304, %v305
        %vm307 = vcmp.eq.f32.partialorder %v304, inf
        %v308 = vsel %vm307, %v304, %v306
        %vm309 = vcmp.eq.f32.partialorder %v304, 0.0
        %v310 = vand.u32 %v304, 2147483648
        %v311 = vsel %vm309, %v310, %v308
        %v312 = vmul.f32 %v311, %v311
        %314 = vset.pattern.permute.xlu0 0
        %315 = vperm.xlu0 %314, %v312
        %v316 = vpop.permute.xlu0 %315
        %v318 = vmul.f32 %v316, %v301
        %v319 = vld [vmem:[%s3] sm:$0x1]
        %v321 = vlaneseq
        %v322 = vshrl.u32 %v321, 7
        %v323 = vsub.s32 0, %v322
        %v324 = vrot.slane %v319, %v323
        %v326 = vadd.f32 %v318, %v324
        %327 = vst [vmem:[%s216] sm:$0xff] %v326
        %s328 = sand.u32 %s121, 1
        %s329 = scalar_lea.sflag [#allocation4], %s328
        %s330 = sand.u32 %s121, 1
        %s331 = smul.addr %s330, 8
        %s332 = scalar_lea.vmem [#allocation5], %s331
        // Predicated region
        $region41: #{tpu_custom_call.1} parent=35 // pred_check
          %p333 = pneg %p131
        $region42: #{tpu_custom_call.1} parent=35 // pred_check_branch
          %335 = sbr.rel (%p333) target = $region44
        $region43: #{tpu_custom_call.1} parent=35 // pred_region
          %s337 = ssub.s32 128, 128
          %338 = vsyncadd %s329, %s337
          %s339 = smul.addr %s19, 128
          %s340 = scalar_lea.hbm %s4, %s339
          %s342 = sshll.u32 %s332, 4
          %s343 = int_to_ptr.vmem [resolvable:$true] %s342
          %345 = dma.vmem_to_hbm [thread:$0]  %s343, 128, %s340, %s329
        $region44: #{tpu_custom_call.1} parent=35 // pred_fallthru
          _
      $region36: #{tpu_custom_call.1} parent=5 // pred_fallthru
        _
      %p346 = scmp.le.s32.totalorder 2, %s14
      // Predicated region
      $region45: #{tpu_custom_call.1} parent=5 // pred_check
        %p347 = pneg %p346
      $region46: #{tpu_custom_call.1} parent=5 // pred_check_branch
        %349 = sbr.rel (%p347) target = $region48
      $region47: #{tpu_custom_call.1} parent=5 // pred_region
        %s350 = ssub.s32 %s14, 2
        // Predicated region
        $region49: #{tpu_custom_call.1} parent=47 // pred_check
          %p351 = pneg %p137
        $region50: #{tpu_custom_call.1} parent=47 // pred_check_branch
          %353 = sbr.rel (%p351) target = $region52
        $region51: #{tpu_custom_call.1} parent=47 // pred_region
          %s354 = sand.u32 %s122, 1
          %s355 = scalar_lea.sflag [#allocation4], %s354
          %s356 = sand.u32 %s122, 1
          %s357 = smul.addr %s356, 8
          %s358 = scalar_lea.vmem [#allocation5], %s357
          %359 = dma.done %s355, 128
        $region52: #{tpu_custom_call.1} parent=47 // pred_fallthru
          _
      $region48: #{tpu_custom_call.1} parent=5 // pred_fallthru
        _
    $region6: #{tpu_custom_call.1} parent=1 // loop_footer
      %s18 = sadd.s32 1, %s14
    $region7: #{tpu_custom_call.1} parent=1 // loop_footer_branch
      %13 = sbr.rel target = $region3
    $region8: #{tpu_custom_call.1} parent=1 // loop_exit
      _
    %360 = vsyncpa [#allocation3], 1
    %s361 = scalar_lea.sflag [#allocation3], 1
    %362 = vsyncpa %s361, 1
    %363 = vsyncpa [#allocation4], 1
    %s364 = scalar_lea.sflag [#allocation4], 1
    %365 = vsyncpa %s364, 1

// kernel: tpu_custom_call.1
$region0: #{tpu_custom_call.1}
  #allocation0 [shape = 'u32[]', space=smem, size = 0x4, offset = 0x4, fixed_abs, tag = 'smem constant byte address 0x4 - core index']
  #allocation1 [shape = 'u32[144,128]{1,0:T(1,128)}', space=vmem, size = 0x12000, scoped, tag = 'internal scratch']
  %s0 = inlined_call_operand.vmem [shape: f32[16,1], index: 0, kind: input, shape index: {}]
  %s1 = inlined_call_operand.vmem [shape: f32[16,32], index: 1, kind: input, shape index: {}]
  %s2 = inlined_call_operand.hbm [shape: f32[32,128], index: 2, kind: input, shape index: {}]
  %s3 = inlined_call_operand.vmem [shape: f32[1,128], index: 3, kind: input, shape index: {}]
  %s4 = inlined_call_operand.hbm [shape: f32[16,128], index: 4, kind: output, shape index: {}]
  %s5 = sld [smem:[#allocation0]]
  $region53: #{tpu_custom_call.1} parent=0
    _
  %s7 = ssub.s32 1, %s5
  %s8 = scalar_select 0, %s7, %s5
  $region1: #{tpu_custom_call.1} parent=0
    #allocation2 [shape = 'u8[16384]{0}', space=vmem, size = 0x4000, scoped, tag = 'input window, operand 2, single buffered']
    #allocation3 [shape = 's32[2]{0}', space=sflag, size = 0x8, scoped, tag = 'scoped memory for tpu_custom_call.1']
    #allocation4 [shape = 's32[2]{0}', space=sflag, size = 0x8, scoped, tag = 'scoped memory for tpu_custom_call.1']
    #allocation5 [shape = 'u8[8192]{0}', space=vmem, size = 0x2000, scoped, tag = 'output window, operand 0']
    %9 = vsyncpa [#allocation3], 0
    %10 = vsyncpa [#allocation4], 0
    %s11 = scalar_lea.sflag [#allocation4], 1
    %12 = vsyncpa %s11, 0
    loop: start=0, step=1, limit=4
    $region2: #{tpu_custom_call.1} parent=1 // loop_pre_header
      _
    $region3: #{tpu_custom_call.1} parent=1 // loop_header
      %s14 = sphi 0, %s18
      %p15 = scmp.ge.s32.totalorder %s14, 4
      %s24 = sphi 0, %s26
      %s27 = sphi 0, %s24
      %s28 = sphi 0, %s27
      %s44 = sphi 0, %s28
      %s50 = sphi 0, %s52
      %s53 = sphi 0, %s50
      %s54 = sphi 0, %s53
      %s70 = sphi 0, %s54
      %s74 = sphi 0, %s74
      %s76 = sphi 0, %s74
      %s77 = sphi 0, %s76
      %s91 = sphi 0, %s77
      %s95 = sphi 0, %s95
      %s97 = sphi 0, %s95
      %s98 = sphi 0, %s97
      %s112 = sphi 0, %s98
      %s118 = sphi 0, %s120
      %s121 = sphi 0, %s118
      %s122 = sphi 0, %s121
      %s138 = sphi 0, %s122
    $region4: #{tpu_custom_call.1} parent=1 // loop_header_branch
      %17 = sbr.rel (%p15) target = $region8
    $region5: #{tpu_custom_call.1} parent=1 // loop_body
      %s19 = ssub.s32 %s14, 1
      %s20 = ssub.s32 %s14, 2
      %s21 = sadd.s32 %s14, 1
      %s22 = ssub.s32 %s14, %s21
      %p23 = scmp.eq.s32.totalorder %s22, 0
      %s25 = sadd.s32 %s24, 1
      %s26 = scalar_select %p23, %s24, %s25
      %p29 = pneg %p23
      %p30 = scmp.eq.s32.totalorder %s14, 1
      %p31 = por %p29, %p30
      %p32 = scmp.ne.s32.totalorder %s24, %s27
      %p33 = scmp.eq.s32.totalorder %s14, 0
      %p34 = por %p32, %p33
      %p35 = scmp.ne.s32.totalorder %s24, %s27
      %p36 = scmp.eq.s32.totalorder %s19, 1
      %p37 = por %p35, %p36
      %p38 = scmp.ne.s32.totalorder %s27, %s28
      %p39 = scmp.eq.s32.totalorder %s19, 0
      %p40 = por %p38, %p39
      %p41 = scmp.ne.s32.totalorder %s27, %s28
      %p42 = scmp.eq.s32.totalorder %s20, 1
      %p43 = por %p41, %p42
      %p45 = scmp.ne.s32.totalorder %s28, %s44
      %p46 = scmp.eq.s32.totalorder %s20, 0
      %p47 = por %p45, %p46
      %s48 = ssub.s32 %s14, %s21
      %p49 = scmp.eq.s32.totalorder %s48, 0
      %s51 = sadd.s32 %s50, 1
      %s52 = scalar_select %p49, %s50, %s51
      %p55 = pneg %p49
      %p56 = scmp.eq.s32.totalorder %s14, 1
      %p57 = por %p55, %p56
      %p58 = scmp.ne.s32.totalorder %s50, %s53
      %p59 = scmp.eq.s32.totalorder %s14, 0
      %p60 = por %p58, %p59
      %p61 = scmp.ne.s32.totalorder %s50, %s53
      %p62 = scmp.eq.s32.totalorder %s19, 1
      %p63 = por %p61, %p62
      %p64 = scmp.ne.s32.totalorder %s53, %s54
      %p65 = scmp.eq.s32.totalorder %s19, 0
      %p66 = por %p64, %p65
      %p67 = scmp.ne.s32.totalorder %s53, %s54
      %p68 = scmp.eq.s32.totalorder %s20, 1
      %p69 = por %p67, %p68
      %p71 = scmp.ne.s32.totalorder %s54, %s70
      %p72 = scmp.eq.s32.totalorder %s20, 0
      %p73 = por %p71, %p72
      %s75 = sadd.s32 %s74, 1
      %p78 = scmp.eq.s32.totalorder %s14, 1
      %p79 = scmp.ne.s32.totalorder %s74, %s76
      %p80 = scmp.eq.s32.totalorder %s14, 0
      %p81 = por %p79, %p80
      %p82 = scmp.ne.s32.totalorder %s74, %s76
      %p83 = scmp.eq.s32.totalorder %s19, 1
      %p84 = por %p82, %p83
      %p85 = scmp.ne.s32.totalorder %s76, %s77
      %p86 = scmp.eq.s32.totalorder %s19, 0
      %p87 = por %p85, %p86
      %p88 = scmp.ne.s32.totalorder %s76, %s77
      %p89 = scmp.eq.s32.totalorder %s20, 1
      %p90 = por %p88, %p89
      %p92 = scmp.ne.s32.totalorder %s77, %s91
      %p93 = scmp.eq.s32.totalorder %s20, 0
      %p94 = por %p92, %p93
      %s96 = sadd.s32 %s95, 1
      %p99 = scmp.eq.s32.totalorder %s14, 1
      %p100 = scmp.ne.s32.totalorder %s95, %s97
      %p101 = scmp.eq.s32.totalorder %s14, 0
      %p102 = por %p100, %p101
      %p103 = scmp.ne.s32.totalorder %s95, %s97
      %p104 = scmp.eq.s32.totalorder %s19, 1
      %p105 = por %p103, %p104
      %p106 = scmp.ne.s32.totalorder %s97, %s98
      %p107 = scmp.eq.s32.totalorder %s19, 0
      %p108 = por %p106, %p107
      %p109 = scmp.ne.s32.totalorder %s97, %s98
      %p110 = scmp.eq.s32.totalorder %s20, 1
      %p111 = por %p109, %p110
      %p113 = scmp.ne.s32.totalorder %s98, %s112
      %p114 = scmp.eq.s32.totalorder %s20, 0
      %p115 = por %p113, %p114
      %s116 = ssub.s32 %s14, %s21
      %p117 = scmp.eq.s32.totalorder %s116, 0
      %s119 = sadd.s32 %s118, 1
      %s120 = scalar_select %p117, %s118, %s119
      %p123 = pneg %p117
      %p124 = scmp.eq.s32.totalorder %s14, 1
      %p125 = por %p123, %p124
      %p126 = scmp.ne.s32.totalorder %s118, %s121
      %p127 = scmp.eq.s32.totalorder %s14, 0
      %p128 = por %p126, %p127
      %p129 = scmp.ne.s32.totalorder %s118, %s121
      %p130 = scmp.eq.s32.totalorder %s19, 1
      %p131 = por %p129, %p130
      %p132 = scmp.ne.s32.totalorder %s121, %s122
      %p133 = scmp.eq.s32.totalorder %s19, 0
      %p134 = por %p132, %p133
      %p135 = scmp.ne.s32.totalorder %s121, %s122
      %p136 = scmp.eq.s32.totalorder %s20, 1
      %p137 = por %p135, %p136
      %p139 = scmp.ne.s32.totalorder %s122, %s138
      %p140 = scmp.eq.s32.totalorder %s20, 0
      %p141 = por %p139, %p140
      %p142 = scmp.le.s32.totalorder 1, %s14
      %p143 = scmp.lt.s32.totalorder %s14, 3
      %p144 = pnand %p142, %p143
      %p145 = pneg %p144
      // Predicated region
      $region9: #{tpu_custom_call.1} parent=5 // pred_check
        _
      $region10: #{tpu_custom_call.1} parent=5 // pred_check_branch
        %147 = sbr.rel (%p144) target = $region12
      $region11: #{tpu_custom_call.1} parent=5 // pred_region
        %s148 = ssub.s32 %s14, 1
        // Predicated region
        $region13: #{tpu_custom_call.1} parent=11 // pred_check
          %p149 = pneg %p87
        $region14: #{tpu_custom_call.1} parent=11 // pred_check_branch
          %151 = sbr.rel (%p149) target = $region16
        $region15: #{tpu_custom_call.1} parent=11 // pred_region
          %s153 = ssub.s32 512, 512
          %154 = vsyncadd [#allocation3], %s153
          %s155 = sshll.u32 [#allocation2], 4
          %s156 = int_to_ptr.vmem [resolvable:$true] %s155
          %161 = dma.hbm_to_vmem [thread:$0]  %s2, 512, %s156, [#allocation3], 128, 128, 8
        $region16: #{tpu_custom_call.1} parent=11 // pred_fallthru
          _
        // Predicated region
        $region17: #{tpu_custom_call.1} parent=11 // pred_check
          %p162 = pneg %p108
        $region18: #{tpu_custom_call.1} parent=11 // pred_check_branch
          %164 = sbr.rel (%p162) target = $region20
        $region19: #{tpu_custom_call.1} parent=11 // pred_region
          _
        $region20: #{tpu_custom_call.1} parent=11 // pred_fallthru
          _
      $region12: #{tpu_custom_call.1} parent=5 // pred_fallthru
        _
      %p165 = scmp.lt.s32.totalorder %s14, 2
      // Predicated region
      $region21: #{tpu_custom_call.1} parent=5 // pred_check
        %p166 = pneg %p165
      $region22: #{tpu_custom_call.1} parent=5 // pred_check_branch
        %168 = sbr.rel (%p166) target = $region24
      $region23: #{tpu_custom_call.1} parent=5 // pred_region
        // Predicated region
        $region25: #{tpu_custom_call.1} parent=23 // pred_check
          %p169 = pneg %p34
        $region26: #{tpu_custom_call.1} parent=23 // pred_check_branch
          %171 = sbr.rel (%p169) target = $region28
        $region27: #{tpu_custom_call.1} parent=23 // pred_region
          %p172 = scmp.lt.s32.totalorder %s14, 1
          %s173 = scalar_select %p172, %s14, 1
          %s174 = smul.addr %s173, 8
          %s175 = scalar_lea.vmem %s0, %s174
        $region28: #{tpu_custom_call.1} parent=23 // pred_fallthru
          _
        // Predicated region
        $region29: #{tpu_custom_call.1} parent=23 // pred_check
          %p176 = pneg %p60
        $region30: #{tpu_custom_call.1} parent=23 // pred_check_branch
          %178 = sbr.rel (%p176) target = $region32
        $region31: #{tpu_custom_call.1} parent=23 // pred_region
          %p179 = scmp.lt.s32.totalorder %s14, 1
          %s180 = scalar_select %p179, %s14, 1
          %s181 = smul.addr %s180, 8
          %s182 = scalar_lea.vmem %s1, %s181
        $region32: #{tpu_custom_call.1} parent=23 // pred_fallthru
          _
      $region24: #{tpu_custom_call.1} parent=5 // pred_fallthru
        _
      %p183 = scmp.le.s32.totalorder 1, %s14
      %p184 = scmp.lt.s32.totalorder %s14, 3
      %p185 = pnand %p183, %p184
      %p186 = pneg %p185
      // Predicated region
      $region33: #{tpu_custom_call.1} parent=5 // pred_check
        _
      $region34: #{tpu_custom_call.1} parent=5 // pred_check_branch
        %188 = sbr.rel (%p185) target = $region36
      $region35: #{tpu_custom_call.1} parent=5 // pred_region
        %s189 = ssub.s32 %s14, 1
        // Predicated region
        $region37: #{tpu_custom_call.1} parent=35 // pred_check
          %p190 = pneg %p87
        $region38: #{tpu_custom_call.1} parent=35 // pred_check_branch
          %192 = sbr.rel (%p190) target = $region40
        $region39: #{tpu_custom_call.1} parent=35 // pred_region
          %193 = dma.done [#allocation3], 512
        $region40: #{tpu_custom_call.1} parent=35 // pred_fallthru
          _
        %p194 = scmp.lt.s32.totalorder %s19, 1
        %s195 = scalar_select %p194, %s19, 1
        %s196 = smul.addr %s195, 8
        %s197 = scalar_lea.vmem %s0, %s196
        %p198 = pneg %p40
        %p199 = pneg %p37
        %p200 = scmp.lt.s32.totalorder %s19, 1
        %s201 = scalar_select %p200, %s19, 1
        %s202 = smul.addr %s201, 8
        %s203 = scalar_lea.vmem %s1, %s202
        %p204 = pneg %p66
        %p205 = pneg %p63
        %p206 = pneg %p87
        %p207 = pneg %p84
        %p208 = pneg %p108
        %p209 = pneg %p105
        %p210 = pneg %p134
        %p211 = pneg %p131
        %s212 = sand.u32 %s121, 1
        %s213 = scalar_lea.sflag [#allocation4], %s212
        %s214 = sand.u32 %s121, 1
        %s215 = smul.addr %s214, 8
        %s216 = scalar_lea.vmem [#allocation5], %s215
        %p217 = scmp.lt.s32.totalorder %s19, 1
        %s218 = scalar_select %p217, %s19, 1
        %s219 = smul.addr %s218, 8
        %s220 = scalar_lea.vmem %s0, %s219
        %p221 = scmp.lt.s32.totalorder %s19, 1
        %s222 = scalar_select %p221, %s19, 1
        %s223 = smul.addr %s222, 8
        %s224 = scalar_lea.vmem %s1, %s223
        %v225 = vld [vmem:[%s224] sm:$0xff]
        %v226 = vld [vmem:[#allocation2] sm:$0xff]
        %v227 = vld [vmem:[#allocation2 + $0x8] sm:$0xff]
        %v228 = vld [vmem:[#allocation2 + $0x10] sm:$0xff]
        %v229 = vld [vmem:[#allocation2 + $0x18] sm:$0xff]
        %vm230 = vcmask 261120
        %v232 = vsel %vm230, %v225, 0
        %234 = vmatprep.subr.mxu0 0.0
        %235 = vmatpush1.msra.mxu0 0.0
        %236 = vmatprep.subr.mxu0 0.0
        %237 = vmatpush1.msra.mxu0 0.0
        %238 = vmatprep.subr.mxu0 0.0
        %239 = vmatpush1.msra.mxu0 0.0
        %240 = vmatprep.subr.mxu0 0.0
        %241 = vmatpush1.msra.mxu0 0.0
        %242 = vmatprep.subr.mxu0 0.0
        %243 = vmatpush1.msra.mxu0 0.0
        %244 = vmatprep.subr.mxu0 0.0
        %245 = vmatpush1.msra.mxu0 0.0
        %246 = vmatprep.subr.mxu0 0.0
        %247 = vmatpush1.msra.mxu0 0.0
        %248 = vmatprep.subr.mxu0 0.0
        %249 = vmatpush1.msra.mxu0 0.0
        %250 = vmatprep.subr.mxu0 0.0
        %251 = vmatpush1.msra.mxu0 0.0
        %252 = vmatprep.subr.mxu0 0.0
        %253 = vmatpush1.msra.mxu0 0.0
        %254 = vmatprep.subr.mxu0 0.0
        %255 = vmatpush1.msra.mxu0 0.0
        %256 = vmatprep.subr.mxu0 0.0
        %257 = vmatpush1.msra.mxu0 0.0
        %258 = vmatprep.subr.mxu0 0.0
        %259 = vmatpush1.msra.mxu0 %v229
        %260 = vmatprep.subr.mxu0 0.0
        %261 = vmatpush1.msra.mxu0 %v228
        %262 = vmatprep.subr.mxu0 0.0
        %263 = vmatpush1.msra.mxu0 %v227
        %264 = vmatprep.subr.mxu0 0.0
        %265 = vmatpush1.msra.mxu0 %v226
        %266 = vmatprep.subr.mxu0 0.0
        %267 = vmatpush2.msra.mxu0 0.0
        %268 = vmatprep.subr.mxu0 0.0
        %269 = vmatpush2.msra.mxu0 0.0
        %270 = vmatprep.subr.mxu0 0.0
        %271 = vmatpush2.msra.mxu0 0.0
        %272 = vmatprep.subr.mxu0 0.0
        %273 = vmatpush2.msra.mxu0 0.0
        %274 = vmatprep.subr.mxu0 0.0
        %275 = vmatpush2.msra.mxu0 0.0
        %276 = vmatprep.subr.mxu0 0.0
        %277 = vmatpush2.msra.mxu0 0.0
        %278 = vmatprep.subr.mxu0 0.0
        %279 = vmatpush2.msra.mxu0 0.0
        %280 = vmatprep.subr.mxu0 0.0
        %281 = vmatpush2.msra.mxu0 0.0
        %282 = vmatprep.subr.mxu0 0.0
        %283 = vmatpush2.msra.mxu0 0.0
        %284 = vmatprep.subr.mxu0 0.0
        %285 = vmatpush2.msra.mxu0 0.0
        %286 = vmatprep.subr.mxu0 0.0
        %287 = vmatpush2.msra.mxu0 0.0
        %288 = vmatprep.subr.mxu0 0.0
        %289 = vmatpush2.msra.mxu0 0.0
        %290 = vmatprep.subr.mxu0 0.0
        %291 = vmatpush2.msra.mxu0 0.0
        %292 = vmatprep.subr.mxu0 0.0
        %293 = vmatpush2.msra.mxu0 0.0
        %294 = vmatprep.subr.mxu0 0.0
        %295 = vmatpush2.msra.mxu0 0.0
        %296 = vmatprep.subr.mxu0 0.0
        %297 = vmatpush2.msra.mxu0 0.0
        %298 = vmatprep.mubr.f32.mxu0 0.0
        %299 = vmatmul.mubr.f32.gmra.mxu0 %v232
        %v300 = vpop.f32.mrf.mxu0
        %v301 = vadd.f32 0.0, %v300
        %v302 = vpop.f32.mrf.mxu0
        %303 = vdwg.mxu0
        %v304 = vld [vmem:[%s220] sm:$0xff]
        %v305 = vrsqrt.pop %v304
        %v306 = vmul.f32 %v304, %v305
        %vm307 = vcmp.eq.f32.partialorder %v304, inf
        %v308 = vsel %vm307, %v304, %v306
        %vm309 = vcmp.eq.f32.partialorder %v304, 0.0
        %v310 = vand.u32 %v304, 2147483648
        %v311 = vsel %vm309, %v310, %v308
        %v312 = vmul.f32 %v311, %v311
        %314 = vset.pattern.permute.xlu0 0
        %315 = vperm.xlu0 %314, %v312
        %v316 = vpop.permute.xlu0 %315
        %v318 = vmul.f32 %v316, %v301
        %v319 = vld [vmem:[%s3] sm:$0x1]
        %v321 = vlaneseq
        %v322 = vshrl.u32 %v321, 7
        %v323 = vsub.s32 0, %v322
        %v324 = vrot.slane %v319, %v323
        %v326 = vadd.f32 %v318, %v324
        %327 = vst [vmem:[%s216] sm:$0xff] %v326
        %s328 = sand.u32 %s121, 1
        %s329 = scalar_lea.sflag [#allocation4], %s328
        %s330 = sand.u32 %s121, 1
        %s331 = smul.addr %s330, 8
        %s332 = scalar_lea.vmem [#allocation5], %s331
        // Predicated region
        $region41: #{tpu_custom_call.1} parent=35 // pred_check
          %p333 = pneg %p131
        $region42: #{tpu_custom_call.1} parent=35 // pred_check_branch
          %335 = sbr.rel (%p333) target = $region44
        $region43: #{tpu_custom_call.1} parent=35 // pred_region
          %s337 = ssub.s32 128, 128
          %338 = vsyncadd %s329, %s337
          %s339 = smul.addr %s19, 128
          %s340 = scalar_lea.hbm %s4, %s339
          %s342 = sshll.u32 %s332, 4
          %s343 = int_to_ptr.vmem [resolvable:$true] %s342
          %345 = dma.vmem_to_hbm [thread:$0]  %s343, 128, %s340, %s329
        $region44: #{tpu_custom_call.1} parent=35 // pred_fallthru
          _
      $region36: #{tpu_custom_call.1} parent=5 // pred_fallthru
        _
      %p346 = scmp.le.s32.totalorder 2, %s14
      // Predicated region
      $region45: #{tpu_custom_call.1} parent=5 // pred_check
        %p347 = pneg %p346
      $region46: #{tpu_custom_call.1} parent=5 // pred_check_branch
        %349 = sbr.rel (%p347) target = $region48
      $region47: #{tpu_custom_call.1} parent=5 // pred_region
        %s350 = ssub.s32 %s14, 2
        // Predicated region
        $region49: #{tpu_custom_call.1} parent=47 // pred_check
          %p351 = pneg %p137
        $region50: #{tpu_custom_call.1} parent=47 // pred_check_branch
          %353 = sbr.rel (%p351) target = $region52
        $region51: #{tpu_custom_call.1} parent=47 // pred_region
          %s354 = sand.u32 %s122, 1
          %s355 = scalar_lea.sflag [#allocation4], %s354
          %s356 = sand.u32 %s122, 1
          %s357 = smul.addr %s356, 8
          %s358 = scalar_lea.vmem [#allocation5], %s357
          %359 = dma.done %s355, 128
        $region52: #{tpu_custom_call.1} parent=47 // pred_fallthru
          _
      $region48: #{tpu_custom_call.1} parent=5 // pred_fallthru
        _
    $region6: #{tpu_custom_call.1} parent=1 // loop_footer
      %s18 = sadd.s32 1, %s14
    $region7: #{tpu_custom_call.1} parent=1 // loop_footer_branch
      %13 = sbr.rel target = $region3
    $region8: #{tpu_custom_call.1} parent=1 // loop_exit
      _
    %360 = vsyncpa [#allocation3], 1
    %s361 = scalar_lea.sflag [#allocation3], 1
    %362 = vsyncpa %s361, 1
    %363 = vsyncpa [#allocation4], 1
    %s364 = scalar_lea.sflag [#allocation4], 1
    %365 = vsyncpa %s364, 1

</llo_original>
